<compile_context>
chip_gen: v7x
topology: tpu7x:2x2x1
jax: 0.10.0
libtpu: 0.0.40
codegen_flags: <defaults>
</compile_context>

<pallas_src>
import numpy as np
import jax
import jax.numpy as jnp
from jax import lax
from jax.experimental import pallas as pl
from jax.experimental.pallas import tpu as pltpu

C_IN = 32
C_OUT = 4
WIN = 8                 # receptive field of one output column (2*2*2); windows are disjoint
K_RAW = WIN * C_IN      # 256 contraction rows of real window data
K_AUG = K_RAW + 8       # + 3 bias-indicator rows, padded up to a multiple of 8
LANE_TILE_MAX = 512     # lanes per grid step (multiple of 128 -> ~0.5 MiB input block)

LAYER_CFG = [(32, 16, 0), (16, 8, 1), (8, 4, 1)]   # (C_in, C_out, padding); kernel=2, stride=2


def _conv_out_len(L, pad):
    # PyTorch Conv1d, kernel=2, stride=2: floor((L + 2p - 2)/2) + 1
    return (L + 2 * pad - 2) // 2 + 1


def _stack_lens(L):
    La = _conv_out_len(L, 0)
    Lb = _conv_out_len(La, 1)
    Lc = _conv_out_len(Lb, 1)
    return La, Lb, Lc


# ----------------------------- host-side weight folding (numpy, O(1)) -----------------------------

def _fold_params_np(params, L):
    """Fold conva∘convb∘convc into one shared (4, K_AUG) matrix plus per-column slot masks.

    Window slot t of output column k reads x[8k - 6 + t] and feeds through taps
    (s, r, u) = (t//4, (t//2) % 2, t % 2), which depend only on t.  Hence all columns share
    E_full[:, t*32:(t+1)*32] = Wc_s @ Wb_r @ Wa_u; boundary columns only zero out the slots
    whose intermediate a/b column is clipped (mask) and drop the matching bias terms.
    """
    (Wa, ba), (Wb, bb), (Wc, bc) = [(np.asarray(W, np.float64), np.asarray(b, np.float64))
                                    for W, b in params]
    La, Lb, Lc = _stack_lens(L)
    Wa_t = [Wa[:, :, u] for u in range(2)]      # (16, 32)
    Wb_t = [Wb[:, :, r] for r in range(2)]      # (8, 16)
    Wc_t = [Wc[:, :, s] for s in range(2)]      # (4, 8)

    def taps(t):
        return t // 4, (t // 2) % 2, t % 2

    W_slot = np.stack([Wc_t[s] @ Wb_t[r] @ Wa_t[u] for s, r, u in map(taps, range(WIN))])  # (8,4,32)
    E_full = W_slot.transpose(1, 0, 2).reshape(C_OUT, K_RAW)   # column index = slot*32 + chan

    def slot_mask(k):
        m = np.zeros(WIN)
        for t in range(WIN):
            s, r, _u = taps(t)
            jb = 2 * k - 1 + s
            ia = 2 * jb - 1 + r
            m[t] = 1.0 if (0 <= jb < Lb and 0 <= ia < La) else 0.0
        return m

    def bias(k):
        f = bc.copy()
        for s in range(2):
            jb = 2 * k - 1 + s
            if not (0 <= jb < Lb):
                continue
            f = f + Wc_t[s] @ bb
            for r in range(2):
                ia = 2 * jb - 1 + r
                if 0 <= ia < La:
                    f = f + Wc_t[s] @ Wb_t[r] @ ba
        return f

    # Interior columns (1 <= k <= Lc-2) are translation-invariant (all paths valid, shared
    # bias); only the first / last columns need their own mask & bias.
    mask = np.ones((Lc, WIN))
    mask[0] = slot_mask(0)
    mask[Lc - 1] = slot_mask(Lc - 1)

    f_first = bias(0)
    f_last = bias(Lc - 1)
    f_mid = bias(1) if Lc >= 3 else np.zeros(C_OUT)   # unused when there is no interior column

    E_aug = np.zeros((C_OUT, K_AUG), np.float32)
    E_aug[:, :K_RAW] = E_full
    E_aug[:, K_RAW + 0] = f_first
    E_aug[:, K_RAW + 1] = f_mid
    E_aug[:, K_RAW + 2] = f_last
    return E_aug, mask.astype(np.float32)


# ------------------------------------------- kernel -------------------------------------------

def _encode_kernel(xw_ref, e_ref, out_ref):
    # xw_ref : (K_AUG, T)  window data + bias-indicator rows, (column, batch) on lanes
    # e_ref  : (4, K_AUG)  folded weights + bias columns (grid-invariant, resident)
    # out_ref: (4, T)      lane-dense output tile
    out_ref[...] = jnp.dot(e_ref[...], xw_ref[...],
                           preferred_element_type=jnp.float32).astype(out_ref.dtype)


def make_encode32small(params, L):
    """Build a jitted forward(x: (N, 32, L)) -> (N, 4, Lc) for fixed params / L.

    The numpy fold runs once here (cache the returned closure per parameter set)."""
    _, _, Lc = _stack_lens(L)
    E_aug, mask = _fold_params_np(params, L)

    @jax.jit
    def forward(x):
        N, C, Lx = x.shape
        assert C == C_IN and Lx == L

        # ---- wrapper-side layout plumbing (one fused XLA pass over the input) ----
        used = min(L, WIN * Lc - 6)                    # trailing x cols may be unused
        xp = jnp.pad(x[:, :, :used], ((0, 0), (0, 0), (6, WIN * Lc - 6 - used)))
        xw = xp.reshape(N, C_IN, Lc, WIN) * jnp.asarray(mask)[None, None]   # zero clipped paths
        xw = xw.transpose(3, 1, 2, 0).reshape(K_RAW, Lc * N)  # row = slot*32+chan, lane = col*N + n

        # bias-indicator rows (affine-as-linear): exactly one of them is 1 per lane
        col = jnp.arange(Lc * N, dtype=jnp.int32) // N
        ind = jnp.stack([col == 0,
                         (col > 0) & (col < Lc - 1),
                         (col == Lc - 1) & (col != 0)]).astype(x.dtype)     # (3, Lc*N)
        pad_rows = jnp.zeros((K_AUG - K_RAW - 3, Lc * N), x.dtype)
        xw_aug = jnp.concatenate([xw, ind, pad_rows], axis=0)               # (K_AUG, Lc*N)

        # ---- lane tiling: multiple of 128, <= LANE_TILE_MAX; padded tail lanes are zero ----
        P_raw = Lc * N
        T = min(LANE_TILE_MAX, pl.cdiv(P_raw, 128) * 128)
        P = pl.cdiv(P_raw, T) * T
        if P != P_raw:
            xw_aug = jnp.pad(xw_aug, ((0, 0), (0, P - P_raw)))

        out = pl.pallas_call(
            _encode_kernel,
            out_shape=jax.ShapeDtypeStruct((C_OUT, P), x.dtype),
            grid=(P // T,),
            in_specs=[
                pl.BlockSpec((K_AUG, T), lambda b: (0, b)),        # streamed input tile
                pl.BlockSpec((C_OUT, K_AUG), lambda b: (0, 0)),    # resident folded weights
            ],
            out_specs=pl.BlockSpec((C_OUT, T), lambda b: (0, b)),  # lane-dense stores
            compiler_params=pltpu.CompilerParams(
                dimension_semantics=("parallel",)),                # shards tiles on v7x's 2 TCs
        )(xw_aug, jnp.asarray(E_aug))

        # back to PyTorch's (N, C_out, L_out); this slab is 64x smaller than the input
        return out[:, :P_raw].reshape(C_OUT, Lc, N).transpose(2, 0, 1)

    return forward


# ----------------------- pure-JAX reference (PyTorch semantics) -----------------------

def _conv1d_ref(x, W, b, stride, padding):
    y = lax.conv_general_dilated(
        x, W, window_strides=(stride,), padding=[(padding, padding)],
        dimension_numbers=("NCH", "OIH", "NCH"))
    return y + b.reshape(1, -1, 1)


def encode32small_reference(x, params):
    for (W, b), (_ci, _co, pad) in zip(params, LAYER_CFG):
        x = _conv1d_ref(x, W, b, stride=2, padding=pad)
    return x


# ------------------------------------ setup / main ------------------------------------

def init_params(key):
    params = []
    for (cin, cout, _pad) in LAYER_CFG:
        key, kw, kb = jax.random.split(key, 3)
        bound = 1.0 / np.sqrt(cin * 2)     # deterministic synthetic init
        W = jax.random.uniform(kw, (cout, cin, 2), jnp.float32, -bound, bound)
        b = jax.random.uniform(kb, (cout,), jnp.float32, -bound, bound)
        params.append((W, b))
    return params


if __name__ == "__main__":
    key = jax.random.PRNGKey(0)
    kx1, kx2, kp = jax.random.split(key, 3)
    params = init_params(kp)

    # main case (shapes implied by the module: 32 input channels)
    N, L = 8, 32
    x = jax.random.normal(kx1, (N, C_IN, L), jnp.float32)
    fwd = make_encode32small(params, L)
    y = jax.block_until_ready(fwd(x))
    y_ref = encode32small_reference(x, params)
    assert y.shape == y_ref.shape, (y.shape, y_ref.shape)
    np.testing.assert_allclose(np.asarray(y), np.asarray(y_ref), rtol=1e-4, atol=1e-4)

    # odd-length case exercising boundary-column path clipping / window truncation
    N2, L2 = 3, 33
    x2 = jax.random.normal(kx2, (N2, C_IN, L2), jnp.float32)
    y2 = jax.block_until_ready(make_encode32small(params, L2)(x2))
    y2_ref = encode32small_reference(x2, params)
    assert y2.shape == y2_ref.shape, (y2.shape, y2_ref.shape)
    np.testing.assert_allclose(np.asarray(y2), np.asarray(y2_ref), rtol=1e-4, atol=1e-4)

    print("KERNEL_OK")
</pallas_src>

<mosaic_0001>
module attributes {stable_mosaic.version = 11 : i64} {
  func.func @_encode_kernel(%arg0: i32, %arg1: memref<264x128xf32, #tpu.memory_space<vmem>>, %arg2: memref<4x264xf32, #tpu.memory_space<vmem>>, %arg3: memref<4x128xf32, #tpu.memory_space<vmem>>) attributes {dimension_semantics = [#tpu.dimension_semantics<parallel>], iteration_bounds = array<i64: 1>, scalar_prefetch = 0 : i64, scratch_operands = 0 : i64, tpu.core_type = #tpu.core_type<tc>, window_params = [{transform_indices = @transform_0, window_bounds = array<i64: 264, 128>}, {pipeline_mode = #tpu.pipeline_mode<synchronous>, transform_indices = @transform_1, window_bounds = array<i64: 4, 264>}, {transform_indices = @transform_2, window_bounds = array<i64: 4, 128>}]} {
    %c0 = arith.constant 0 : index
    %c0_0 = arith.constant 0 : index
    %0 = vector.load %arg2[%c0, %c0_0] : memref<4x264xf32, #tpu.memory_space<vmem>>, vector<4x264xf32>
    %c0_1 = arith.constant 0 : index
    %c0_2 = arith.constant 0 : index
    %1 = vector.load %arg1[%c0_1, %c0_2] : memref<264x128xf32, #tpu.memory_space<vmem>>, vector<264x128xf32>
    %cst = arith.constant dense<0.000000e+00> : vector<4x128xf32>
    %2 = tpu.matmul %0, %1, %cst {dimension_numbers = #tpu.dot_dimension_numbers<[1], [0], [0], [1], [0, 0, 1, 1], [], []>} : vector<4x264xf32>, vector<264x128xf32>, vector<4x128xf32> -> vector<4x128xf32>
    %c0_3 = arith.constant 0 : index
    %c0_4 = arith.constant 0 : index
    %3 = vector.load %arg3[%c0_3, %c0_4] : memref<4x128xf32, #tpu.memory_space<vmem>>, vector<4x128xf32>
    tpu.vector_store %arg3[%c0_3, %c0_4], %2 {strides = array<i32>} : memref<4x128xf32, #tpu.memory_space<vmem>>, vector<4x128xf32>,
    return
  }
  func.func @transform_0(%arg0: i32) -> (i32, i32) {
    %c0_i32 = arith.constant 0 : i32
    %c0_i32_0 = arith.constant 0 : i32
    return %c0_i32, %arg0 : i32, i32
  }
  func.func @transform_1(%arg0: i32) -> (i32, i32) {
    %c0_i32 = arith.constant 0 : i32
    %c0_i32_0 = arith.constant 0 : i32
    %c0_i32_1 = arith.constant 0 : i32
    return %c0_i32, %c0_i32_0 : i32, i32
  }
  func.func @transform_2(%arg0: i32) -> (i32, i32) {
    %c0_i32 = arith.constant 0 : i32
    %c0_i32_0 = arith.constant 0 : i32
    return %c0_i32, %arg0 : i32, i32
  }
}

</mosaic_0001>

<llo_original>
// kernel: forward.1
$region0: #{forward.1}
  #allocation0 [shape = 'u32[]', space=smem, size = 0x4, offset = 0x4, fixed_abs, tag = 'smem constant byte address 0x4 - core index']
  #allocation1 [shape = 'u32[144,128]{1,0:T(1,128)}', space=vmem, size = 0x12000, scoped, tag = 'internal scratch']
  %s0 = inlined_call_operand.vmem [shape: f32[264,128], index: 0, kind: input, shape index: {}]
  %s1 = inlined_call_operand.vmem [shape: f32[4,264], index: 1, kind: input, shape index: {}]
  %s2 = inlined_call_operand.vmem [shape: f32[4,128], index: 2, kind: output, shape index: {}]
  %s3 = sld [smem:[#allocation0]]
  $region18: #{forward.1} parent=0
    _
  %s5 = ssub.s32 1, %s3
  %s6 = scalar_select 0, %s5, %s3
  // Predicated region
  $region2: #{forward.1} parent=0 // pred_check
    _
  $region3: #{forward.1} parent=0 // pred_check_branch
    %8 = sbr.rel (0) target = $region5
  $region4: #{forward.1} parent=0 // pred_region
    _
  $region5: #{forward.1} parent=0 // pred_fallthru
    _
  // Predicated region
  $region6: #{forward.1} parent=0 // pred_check
    _
  $region7: #{forward.1} parent=0 // pred_check_branch
    %10 = sbr.rel (0) target = $region9
  $region8: #{forward.1} parent=0 // pred_region
    _
  $region9: #{forward.1} parent=0 // pred_fallthru
    _
  %v11 = vld [vmem:[%s1] sm:$0xff]
  %v12 = vld [vmem:[%s1 + $0x8] sm:$0xf]
  %v13 = vld [vmem:[%s0] sm:$0xff]
  %v14 = vld [vmem:[%s0 + $0x8] sm:$0xff]
  %v15 = vld [vmem:[%s0 + $0x10] sm:$0xff]
  %v16 = vld [vmem:[%s0 + $0x18] sm:$0xff]
  %v17 = vld [vmem:[%s0 + $0x20] sm:$0xff]
  %v18 = vld [vmem:[%s0 + $0x28] sm:$0xff]
  %v19 = vld [vmem:[%s0 + $0x30] sm:$0xff]
  %v20 = vld [vmem:[%s0 + $0x38] sm:$0xff]
  %v21 = vld [vmem:[%s0 + $0x40] sm:$0xff]
  %v22 = vld [vmem:[%s0 + $0x48] sm:$0xff]
  %v23 = vld [vmem:[%s0 + $0x50] sm:$0xff]
  %v24 = vld [vmem:[%s0 + $0x58] sm:$0xff]
  %v25 = vld [vmem:[%s0 + $0x60] sm:$0xff]
  %v26 = vld [vmem:[%s0 + $0x68] sm:$0xff]
  %v27 = vld [vmem:[%s0 + $0x70] sm:$0xff]
  %v28 = vld [vmem:[%s0 + $0x78] sm:$0xff]
  %v29 = vld [vmem:[%s0 + $0x80] sm:$0xff]
  %v30 = vld [vmem:[%s0 + $0x88] sm:$0xff]
  %v31 = vld [vmem:[%s0 + $0x90] sm:$0xff]
  %v32 = vld [vmem:[%s0 + $0x98] sm:$0xff]
  %v33 = vld [vmem:[%s0 + $0xa0] sm:$0xff]
  %v34 = vld [vmem:[%s0 + $0xa8] sm:$0xff]
  %v35 = vld [vmem:[%s0 + $0xb0] sm:$0xff]
  %v36 = vld [vmem:[%s0 + $0xb8] sm:$0xff]
  %v37 = vld [vmem:[%s0 + $0xc0] sm:$0xff]
  %v38 = vld [vmem:[%s0 + $0xc8] sm:$0xff]
  %v39 = vld [vmem:[%s0 + $0xd0] sm:$0xff]
  %v40 = vld [vmem:[%s0 + $0xd8] sm:$0xff]
  %v41 = vld [vmem:[%s0 + $0xe0] sm:$0xff]
  %v42 = vld [vmem:[%s0 + $0xe8] sm:$0xff]
  %v43 = vld [vmem:[%s0 + $0xf0] sm:$0xff]
  %v44 = vld [vmem:[%s0 + $0xf8] sm:$0xff]
  %v45 = vld [vmem:[%s0 + $0x100] sm:$0xff]
  %v48 = vcombine.high %v11, %v11
  %vm50 = vcmask 64512
  %v51 = vsel %vm50, %v12, 0
  %53 = vmatprep.subr.mxu0 0.0
  %54 = vmatpush1.msra.mxu0 %v13
  %55 = vmatprep.subr.mxu0 0.0
  %56 = vmatpush1.msra.mxu0 %v14
  %57 = vmatprep.subr.mxu0 0.0
  %58 = vmatpush1.msra.mxu0 %v15
  %59 = vmatprep.subr.mxu0 0.0
  %60 = vmatpush1.msra.mxu0 %v16
  %61 = vmatprep.subr.mxu0 0.0
  %62 = vmatpush1.msra.mxu0 %v17
  %63 = vmatprep.subr.mxu0 0.0
  %64 = vmatpush1.msra.mxu0 %v18
  %65 = vmatprep.subr.mxu0 0.0
  %66 = vmatpush1.msra.mxu0 %v19
  %67 = vmatprep.subr.mxu0 0.0
  %68 = vmatpush1.msra.mxu0 %v20
  %69 = vmatprep.subr.mxu0 0.0
  %70 = vmatpush1.msra.mxu0 %v21
  %71 = vmatprep.subr.mxu0 0.0
  %72 = vmatpush1.msra.mxu0 %v22
  %73 = vmatprep.subr.mxu0 0.0
  %74 = vmatpush1.msra.mxu0 %v23
  %75 = vmatprep.subr.mxu0 0.0
  %76 = vmatpush1.msra.mxu0 %v24
  %77 = vmatprep.subr.mxu0 0.0
  %78 = vmatpush1.msra.mxu0 %v25
  %79 = vmatprep.subr.mxu0 0.0
  %80 = vmatpush1.msra.mxu0 %v26
  %81 = vmatprep.subr.mxu0 0.0
  %82 = vmatpush1.msra.mxu0 %v27
  %83 = vmatprep.subr.mxu0 0.0
  %84 = vmatpush1.msra.mxu0 %v28
  %85 = vmatprep.subr.mxu0 0.0
  %86 = vmatpush1.msra.mxu0 %v29
  %87 = vmatprep.subr.mxu0 0.0
  %88 = vmatpush1.msra.mxu0 %v30
  %89 = vmatprep.subr.mxu0 0.0
  %90 = vmatpush1.msra.mxu0 %v31
  %91 = vmatprep.subr.mxu0 0.0
  %92 = vmatpush1.msra.mxu0 %v32
  %93 = vmatprep.subr.mxu0 0.0
  %94 = vmatpush1.msra.mxu0 %v33
  %95 = vmatprep.subr.mxu0 0.0
  %96 = vmatpush1.msra.mxu0 %v34
  %97 = vmatprep.subr.mxu0 0.0
  %98 = vmatpush1.msra.mxu0 %v35
  %99 = vmatprep.subr.mxu0 0.0
  %100 = vmatpush1.msra.mxu0 %v36
  %101 = vmatprep.subr.mxu0 0.0
  %102 = vmatpush1.msra.mxu0 %v37
  %103 = vmatprep.subr.mxu0 0.0
  %104 = vmatpush1.msra.mxu0 %v38
  %105 = vmatprep.subr.mxu0 0.0
  %106 = vmatpush1.msra.mxu0 %v39
  %107 = vmatprep.subr.mxu0 0.0
  %108 = vmatpush1.msra.mxu0 %v40
  %109 = vmatprep.subr.mxu0 0.0
  %110 = vmatpush1.msra.mxu0 %v41
  %111 = vmatprep.subr.mxu0 0.0
  %112 = vmatpush1.msra.mxu0 %v42
  %113 = vmatprep.subr.mxu0 0.0
  %114 = vmatpush1.msra.mxu0 %v43
  %115 = vmatprep.subr.mxu0 0.0
  %116 = vmatpush1.msra.mxu0 %v44
  %117 = vmatprep.mubr.f32.mxu0 %v48
  %118 = vmatmul.mubr.f32.gmra.mrb[0].mxu0 %v11
  %v119 = vpop.f32.mrb[0].mxu0
  %v120 = vadd.f32 0.0, %v119
  %v121 = vpop.f32.mrb[0].mxu0
  %122 = vdwg.mxu0
  %123 = vmatprep.subr.mxu0 0.0
  %124 = vmatpush1.msra.mxu0 %v45
  %125 = vmatprep.subr.mxu0 0.0
  %126 = vmatpush1.msra.mxu0 0.0
  %127 = vmatprep.subr.mxu0 0.0
  %128 = vmatpush1.msra.mxu0 0.0
  %129 = vmatprep.subr.mxu0 0.0
  %130 = vmatpush1.msra.mxu0 0.0
  %131 = vmatprep.subr.mxu0 0.0
  %132 = vmatpush1.msra.mxu0 0.0
  %133 = vmatprep.subr.mxu0 0.0
  %134 = vmatpush1.msra.mxu0 0.0
  %135 = vmatprep.subr.mxu0 0.0
  %136 = vmatpush1.msra.mxu0 0.0
  %137 = vmatprep.subr.mxu0 0.0
  %138 = vmatpush1.msra.mxu0 0.0
  %139 = vmatprep.subr.mxu0 0.0
  %140 = vmatpush1.msra.mxu0 0.0
  %141 = vmatprep.subr.mxu0 0.0
  %142 = vmatpush1.msra.mxu0 0.0
  %143 = vmatprep.subr.mxu0 0.0
  %144 = vmatpush1.msra.mxu0 0.0
  %145 = vmatprep.subr.mxu0 0.0
  %146 = vmatpush1.msra.mxu0 0.0
  %147 = vmatprep.subr.mxu0 0.0
  %148 = vmatpush1.msra.mxu0 0.0
  %149 = vmatprep.subr.mxu0 0.0
  %150 = vmatpush1.msra.mxu0 0.0
  %151 = vmatprep.subr.mxu0 0.0
  %152 = vmatpush1.msra.mxu0 0.0
  %153 = vmatprep.subr.mxu0 0.0
  %154 = vmatpush1.msra.mxu0 0.0
  %155 = vmatprep.subr.mxu0 0.0
  %156 = vmatpush1.msra.mxu0 0.0
  %157 = vmatprep.subr.mxu0 0.0
  %158 = vmatpush1.msra.mxu0 0.0
  %159 = vmatprep.subr.mxu0 0.0
  %160 = vmatpush1.msra.mxu0 0.0
  %161 = vmatprep.subr.mxu0 0.0
  %162 = vmatpush1.msra.mxu0 0.0
  %163 = vmatprep.subr.mxu0 0.0
  %164 = vmatpush1.msra.mxu0 0.0
  %165 = vmatprep.subr.mxu0 0.0
  %166 = vmatpush1.msra.mxu0 0.0
  %167 = vmatprep.subr.mxu0 0.0
  %168 = vmatpush1.msra.mxu0 0.0
  %169 = vmatprep.subr.mxu0 0.0
  %170 = vmatpush1.msra.mxu0 0.0
  %171 = vmatprep.subr.mxu0 0.0
  %172 = vmatpush1.msra.mxu0 0.0
  %173 = vmatprep.subr.mxu0 0.0
  %174 = vmatpush1.msra.mxu0 0.0
  %175 = vmatprep.subr.mxu0 0.0
  %176 = vmatpush1.msra.mxu0 0.0
  %177 = vmatprep.subr.mxu0 0.0
  %178 = vmatpush1.msra.mxu0 0.0
  %179 = vmatprep.subr.mxu0 0.0
  %180 = vmatpush1.msra.mxu0 0.0
  %181 = vmatprep.subr.mxu0 0.0
  %182 = vmatpush1.msra.mxu0 0.0
  %183 = vmatprep.subr.mxu0 0.0
  %184 = vmatpush1.msra.mxu0 0.0
  %185 = vmatprep.subr.mxu0 0.0
  %186 = vmatpush1.msra.mxu0 0.0
  %187 = vmatprep.mubr.f32.mxu0 0.0
  %188 = vmatmul.mubr.f32.gmra.mrb[0].mxu0 %v51
  %v189 = vpop.f32.mrb[0].mxu0
  %v190 = vadd.f32 %v120, %v189
  %v191 = vpop.f32.mrb[0].mxu0
  %192 = vdwg.mxu0
  %193 = vst [vmem:[%s2] sm:$0xf] %v190
  // Predicated region
  $region10: #{forward.1} parent=0 // pred_check
    _
  $region11: #{forward.1} parent=0 // pred_check_branch
    %195 = sbr.rel (0) target = $region13
  $region12: #{forward.1} parent=0 // pred_region
    _
  $region13: #{forward.1} parent=0 // pred_fallthru
    _
  // Predicated region
  $region14: #{forward.1} parent=0 // pred_check
    _
  $region15: #{forward.1} parent=0 // pred_check_branch
    %197 = sbr.rel (0) target = $region17
  $region16: #{forward.1} parent=0 // pred_region
    _
  $region17: #{forward.1} parent=0 // pred_fallthru
    _

</llo_original>
